<compile_context>
chip_gen: v5e
topology: v5e:2x2
jax: 0.10.0
libtpu: 0.0.40
codegen_flags: <defaults>
</compile_context>

<pallas_src>
import jax
import jax.numpy as jnp
from jax.experimental import pallas as pl
from jax.experimental.pallas import tpu as pltpu


def _policy_kernel(x_ref, w1_ref, b1_ref, w2_ref, b2_ref, w3_ref, b3_ref,
                   out_ref):
    x = x_ref[...].astype(jnp.float32)                           # (19, TB)

    # fc1 + ReLU -> (32, TB)
    h1 = jnp.dot(w1_ref[...], x, preferred_element_type=jnp.float32)
    h1 = jnp.maximum(h1 + b1_ref[...], 0.0)

    # fc2 + ReLU -> (16, TB)
    h2 = jnp.dot(w2_ref[...], h1, preferred_element_type=jnp.float32)
    h2 = jnp.maximum(h2 + b2_ref[...], 0.0)

    # fc3 -> (3, TB)
    logits = jnp.dot(w3_ref[...], h2, preferred_element_type=jnp.float32)
    logits = logits + b3_ref[...]

    # Softmax over the 3 class rows via explicit sublane-row slices (keeps the
    # reduce off an axis=-1 XLU reduce over mostly-padded lanes).
    m = jnp.maximum(jnp.maximum(logits[0:1, :], logits[1:2, :]),
                    logits[2:3, :])                              # (1, TB)
    e = jnp.exp(logits - m)                                      # (3, TB)
    denom = e[0:1, :] + e[1:2, :] + e[2:3, :]                    # (1, TB)
    # Exact divide (NOT pl.reciprocal(approx=True)) so each column sums to 1
    # up to f32 roundoff.
    out_ref[...] = (e / denom).astype(out_ref.dtype)


def policy_network_forward_fm(xt, params, *, tb=32768, use_bf16=False):
    """Feature-major forward: xt is (19, B); returns probabilities (3, B).

    No host-side layout ops (no transpose / pad / slice); prefer this entry
    point when the caller keeps activations feature-major end-to-end.
    """
    f_in, B = xt.shape
    assert f_in == 19
    w1, b1 = params["w1"], params["b1"]
    w2, b2 = params["w2"], params["b2"]
    w3, b3 = params["w3"], params["b3"]

    # Lane-dense batch tile: multiple of 128. Default 32768 keeps the ~0.35us
    # per-grid-step overhead well under the per-step HBM time (sweep 16k-64k
    # per generation). Clamp so the grid has >= 2 steps whenever B > 128 so
    # ("parallel",) can shard the batch axis across both TensorCores on v7x.
    tb = max(128, pl.cdiv(int(tb), 128) * 128)
    b128 = pl.cdiv(B, 128) * 128
    if b128 > 128:
        tb = min(tb, pl.cdiv(b128 // 2, 128) * 128)
    tb = max(128, min(tb, b128))
    grid = (pl.cdiv(B, tb),)          # ragged last tile masked by Pallas

    x_in = xt.astype(jnp.bfloat16) if use_bf16 else xt

    resident = lambda arr: pl.BlockSpec(arr.shape, lambda i: (0, 0))

    return pl.pallas_call(
        _policy_kernel,
        out_shape=jax.ShapeDtypeStruct((3, B), jnp.float32),
        grid=grid,
        in_specs=[
            pl.BlockSpec((19, tb), lambda i: (0, i)),   # pipelined x tiles
            resident(w1), resident(b1),                 # VMEM-resident params
            resident(w2), resident(b2),
            resident(w3), resident(b3),
        ],
        out_specs=pl.BlockSpec((3, tb), lambda i: (0, i)),
        compiler_params=pltpu.CompilerParams(
            dimension_semantics=("parallel",),          # 2-TC sharding on v7x
            vmem_limit_bytes=48 << 20,                  # ~13 MiB @ tb=32768
        ),
    )(x_in, w1, b1, w2, b2, w3, b3)


def policy_network_forward(x, params, *, tb=32768, use_bf16=False,
                           min_pallas_batch=512):
    """PyTorch-layout forward: x is (B, 19); returns (B, 3) softmax probs."""
    B = x.shape[0]
    if B < min_pallas_batch:
        # Tiny-batch bypass: pallas dispatch + 128-lane padding + the two
        # transposes dominate below ~512 rows; let XLA fuse the MLP directly.
        return _reference_forward(x, params)
    # NOTE: this transpose alone is ~2x the kernel's own HBM traffic; callers
    # that can keep x feature-major should use policy_network_forward_fm.
    out_t = policy_network_forward_fm(jnp.transpose(x), params,
                                      tb=tb, use_bf16=use_bf16)
    return jnp.transpose(out_t)


def init_params(key):
    """Deterministic init matching PolicyNetwork's nn.Linear shapes.
    Weights kept in PyTorch (out, in) layout; biases as (out, 1) columns.
    uniform(-1/sqrt(fan_in), 1/sqrt(fan_in)) like nn.Linear."""
    dims = [(19, 32), (32, 16), (16, 3)]
    params = {}
    keys = jax.random.split(key, 2 * len(dims))
    for i, (fan_in, fan_out) in enumerate(dims):
        bound = 1.0 / jnp.sqrt(fan_in)
        w = jax.random.uniform(keys[2 * i], (fan_out, fan_in),
                               minval=-bound, maxval=bound, dtype=jnp.float32)
        b = jax.random.uniform(keys[2 * i + 1], (fan_out, 1),
                               minval=-bound, maxval=bound, dtype=jnp.float32)
        params[f"w{i + 1}"] = w
        params[f"b{i + 1}"] = b
    return params


def _reference_forward(x, params):
    h1 = jnp.maximum(x @ params["w1"].T + params["b1"].T, 0.0)
    h2 = jnp.maximum(h1 @ params["w2"].T + params["b2"].T, 0.0)
    logits = h2 @ params["w3"].T + params["b3"].T
    return jax.nn.softmax(logits, axis=-1)


if __name__ == "__main__":
    key = jax.random.PRNGKey(0)
    k_params, k_x1, k_x2 = jax.random.split(key, 3)
    params = init_params(k_params)

    # 1) Small batch forced through the Pallas kernel (single ragged 128 tile).
    B1 = 8
    x1 = jax.random.normal(k_x1, (B1, 19), dtype=jnp.float32)
    out1 = jax.block_until_ready(
        policy_network_forward(x1, params, tb=128, min_pallas_batch=0))
    ref1 = _reference_forward(x1, params)
    assert out1.shape == (B1, 3)
    assert jnp.allclose(out1, ref1, atol=2e-3, rtol=2e-3), "mismatch (small)"
    assert jnp.allclose(jnp.sum(out1, axis=-1), 1.0, atol=1e-4)

    # 2) Ragged multi-tile batch: >= 2 grid steps, padding-free ragged last
    #    block, pipelined x tiles.
    B2 = 300
    x2 = jax.random.normal(k_x2, (B2, 19), dtype=jnp.float32)
    out2 = jax.block_until_ready(
        policy_network_forward(x2, params, tb=128, min_pallas_batch=0))
    ref2 = _reference_forward(x2, params)
    assert out2.shape == (B2, 3)
    assert jnp.allclose(out2, ref2, atol=2e-3, rtol=2e-3), "mismatch (multi-tile)"
    assert jnp.allclose(jnp.sum(out2, axis=-1), 1.0, atol=1e-4)

    # 3) Tiny-batch default dispatch (XLA-fused bypass path).
    out3 = jax.block_until_ready(policy_network_forward(x1, params))
    assert out3.shape == (B1, 3)

    print("KERNEL_OK")
</pallas_src>

<mosaic_0001>
module attributes {stable_mosaic.version = 11 : i64} {
  func.func @_policy_kernel(%arg0: i32, %arg1: memref<19x128xf32, #tpu.memory_space<vmem>>, %arg2: memref<32x19xf32, #tpu.memory_space<vmem>>, %arg3: memref<32x1xf32, #tpu.memory_space<vmem>>, %arg4: memref<16x32xf32, #tpu.memory_space<vmem>>, %arg5: memref<16x1xf32, #tpu.memory_space<vmem>>, %arg6: memref<3x16xf32, #tpu.memory_space<vmem>>, %arg7: memref<3x1xf32, #tpu.memory_space<vmem>>, %arg8: memref<3x128xf32, #tpu.memory_space<vmem>>) attributes {dimension_semantics = [#tpu.dimension_semantics<parallel>], iteration_bounds = array<i64: 1>, scalar_prefetch = 0 : i64, scratch_operands = 0 : i64, tpu.core_type = #tpu.core_type<tc>, window_params = [{transform_indices = @transform_0, window_bounds = array<i64: 19, 128>}, {pipeline_mode = #tpu.pipeline_mode<synchronous>, transform_indices = @transform_1, window_bounds = array<i64: 32, 19>}, {pipeline_mode = #tpu.pipeline_mode<synchronous>, transform_indices = @transform_2, window_bounds = array<i64: 32, 1>}, {pipeline_mode = #tpu.pipeline_mode<synchronous>, transform_indices = @transform_3, window_bounds = array<i64: 16, 32>}, {pipeline_mode = #tpu.pipeline_mode<synchronous>, transform_indices = @transform_4, window_bounds = array<i64: 16, 1>}, {pipeline_mode = #tpu.pipeline_mode<synchronous>, transform_indices = @transform_5, window_bounds = array<i64: 3, 16>}, {pipeline_mode = #tpu.pipeline_mode<synchronous>, transform_indices = @transform_6, window_bounds = array<i64: 3, 1>}, {transform_indices = @transform_7, window_bounds = array<i64: 3, 128>}]} {
    %c0 = arith.constant 0 : index
    %c0_0 = arith.constant 0 : index
    %0 = vector.load %arg1[%c0, %c0_0] : memref<19x128xf32, #tpu.memory_space<vmem>>, vector<19x128xf32>
    %c0_1 = arith.constant 0 : index
    %c0_2 = arith.constant 0 : index
    %1 = vector.load %arg2[%c0_1, %c0_2] : memref<32x19xf32, #tpu.memory_space<vmem>>, vector<32x19xf32>
    %cst = arith.constant dense<0.000000e+00> : vector<32x128xf32>
    %2 = tpu.matmul %1, %0, %cst {dimension_numbers = #tpu.dot_dimension_numbers<[1], [0], [0], [1], [0, 0, 1, 1], [], []>} : vector<32x19xf32>, vector<19x128xf32>, vector<32x128xf32> -> vector<32x128xf32>
    %c0_3 = arith.constant 0 : index
    %c0_4 = arith.constant 0 : index
    %3 = vector.load %arg3[%c0_3, %c0_4] : memref<32x1xf32, #tpu.memory_space<vmem>>, vector<32x1xf32>
    %4 = vector.broadcast %3 : vector<32x1xf32> to vector<32x128xf32>
    %5 = arith.addf %2, %4 : vector<32x128xf32>
    %cst_5 = arith.constant 0.000000e+00 : f32
    %6 = vector.broadcast %cst_5 : f32 to vector<32x128xf32>
    %7 = arith.maximumf %5, %6 : vector<32x128xf32>
    %c0_6 = arith.constant 0 : index
    %c0_7 = arith.constant 0 : index
    %8 = vector.load %arg4[%c0_6, %c0_7] : memref<16x32xf32, #tpu.memory_space<vmem>>, vector<16x32xf32>
    %cst_8 = arith.constant dense<0.000000e+00> : vector<16x128xf32>
    %9 = tpu.matmul %8, %7, %cst_8 {dimension_numbers = #tpu.dot_dimension_numbers<[1], [0], [0], [1], [0, 0, 1, 1], [], []>} : vector<16x32xf32>, vector<32x128xf32>, vector<16x128xf32> -> vector<16x128xf32>
    %c0_9 = arith.constant 0 : index
    %c0_10 = arith.constant 0 : index
    %10 = vector.load %arg5[%c0_9, %c0_10] : memref<16x1xf32, #tpu.memory_space<vmem>>, vector<16x1xf32>
    %11 = vector.broadcast %10 : vector<16x1xf32> to vector<16x128xf32>
    %12 = arith.addf %9, %11 : vector<16x128xf32>
    %cst_11 = arith.constant 0.000000e+00 : f32
    %13 = vector.broadcast %cst_11 : f32 to vector<16x128xf32>
    %14 = arith.maximumf %12, %13 : vector<16x128xf32>
    %c0_12 = arith.constant 0 : index
    %c0_13 = arith.constant 0 : index
    %15 = vector.load %arg6[%c0_12, %c0_13] : memref<3x16xf32, #tpu.memory_space<vmem>>, vector<3x16xf32>
    %cst_14 = arith.constant dense<0.000000e+00> : vector<3x128xf32>
    %16 = tpu.matmul %15, %14, %cst_14 {dimension_numbers = #tpu.dot_dimension_numbers<[1], [0], [0], [1], [0, 0, 1, 1], [], []>} : vector<3x16xf32>, vector<16x128xf32>, vector<3x128xf32> -> vector<3x128xf32>
    %c0_15 = arith.constant 0 : index
    %c0_16 = arith.constant 0 : index
    %17 = vector.load %arg7[%c0_15, %c0_16] : memref<3x1xf32, #tpu.memory_space<vmem>>, vector<3x1xf32>
    %18 = vector.broadcast %17 : vector<3x1xf32> to vector<3x128xf32>
    %19 = arith.addf %16, %18 : vector<3x128xf32>
    %20 = vector.extract_strided_slice %19 {offsets = [0, 0], sizes = [1, 128], strides = [1, 1]} : vector<3x128xf32> to vector<1x128xf32>
    %21 = vector.extract_strided_slice %19 {offsets = [1, 0], sizes = [1, 128], strides = [1, 1]} : vector<3x128xf32> to vector<1x128xf32>
    %22 = arith.maximumf %20, %21 : vector<1x128xf32>
    %23 = vector.extract_strided_slice %19 {offsets = [2, 0], sizes = [1, 128], strides = [1, 1]} : vector<3x128xf32> to vector<1x128xf32>
    %24 = arith.maximumf %22, %23 : vector<1x128xf32>
    %25 = vector.broadcast %24 : vector<1x128xf32> to vector<3x128xf32>
    %26 = arith.subf %19, %25 : vector<3x128xf32>
    %27 = math.exp %26 : vector<3x128xf32>
    %28 = vector.extract_strided_slice %27 {offsets = [0, 0], sizes = [1, 128], strides = [1, 1]} : vector<3x128xf32> to vector<1x128xf32>
    %29 = vector.extract_strided_slice %27 {offsets = [1, 0], sizes = [1, 128], strides = [1, 1]} : vector<3x128xf32> to vector<1x128xf32>
    %30 = arith.addf %28, %29 : vector<1x128xf32>
    %31 = vector.extract_strided_slice %27 {offsets = [2, 0], sizes = [1, 128], strides = [1, 1]} : vector<3x128xf32> to vector<1x128xf32>
    %32 = arith.addf %30, %31 : vector<1x128xf32>
    %33 = vector.broadcast %32 : vector<1x128xf32> to vector<3x128xf32>
    %34 = arith.divf %27, %33 : vector<3x128xf32>
    %c0_17 = arith.constant 0 : index
    %c0_18 = arith.constant 0 : index
    %35 = vector.load %arg8[%c0_17, %c0_18] : memref<3x128xf32, #tpu.memory_space<vmem>>, vector<3x128xf32>
    tpu.vector_store %arg8[%c0_17, %c0_18], %34 {strides = array<i32>} : memref<3x128xf32, #tpu.memory_space<vmem>>, vector<3x128xf32>,
    return
  }
  func.func @transform_0(%arg0: i32) -> (i32, i32) {
    %c0_i32 = arith.constant 0 : i32
    %c0_i32_0 = arith.constant 0 : i32
    return %c0_i32, %arg0 : i32, i32
  }
  func.func @transform_1(%arg0: i32) -> (i32, i32) {
    %c0_i32 = arith.constant 0 : i32
    %c0_i32_0 = arith.constant 0 : i32
    %c0_i32_1 = arith.constant 0 : i32
    return %c0_i32, %c0_i32_0 : i32, i32
  }
  func.func @transform_2(%arg0: i32) -> (i32, i32) {
    %c0_i32 = arith.constant 0 : i32
    %c0_i32_0 = arith.constant 0 : i32
    %c0_i32_1 = arith.constant 0 : i32
    return %c0_i32, %c0_i32_0 : i32, i32
  }
  func.func @transform_3(%arg0: i32) -> (i32, i32) {
    %c0_i32 = arith.constant 0 : i32
    %c0_i32_0 = arith.constant 0 : i32
    %c0_i32_1 = arith.constant 0 : i32
    return %c0_i32, %c0_i32_0 : i32, i32
  }
  func.func @transform_4(%arg0: i32) -> (i32, i32) {
    %c0_i32 = arith.constant 0 : i32
    %c0_i32_0 = arith.constant 0 : i32
    %c0_i32_1 = arith.constant 0 : i32
    return %c0_i32, %c0_i32_0 : i32, i32
  }
  func.func @transform_5(%arg0: i32) -> (i32, i32) {
    %c0_i32 = arith.constant 0 : i32
    %c0_i32_0 = arith.constant 0 : i32
    %c0_i32_1 = arith.constant 0 : i32
    return %c0_i32, %c0_i32_0 : i32, i32
  }
  func.func @transform_6(%arg0: i32) -> (i32, i32) {
    %c0_i32 = arith.constant 0 : i32
    %c0_i32_0 = arith.constant 0 : i32
    %c0_i32_1 = arith.constant 0 : i32
    return %c0_i32, %c0_i32_0 : i32, i32
  }
  func.func @transform_7(%arg0: i32) -> (i32, i32) {
    %c0_i32 = arith.constant 0 : i32
    %c0_i32_0 = arith.constant 0 : i32
    return %c0_i32, %arg0 : i32, i32
  }
}

</mosaic_0001>

<llo_original>
// kernel: tpu_custom_call.1
$region0: #{tpu_custom_call.1}
  #allocation0 [shape = 'u32[]', space=smem, size = 0x4, offset = 0x4, fixed_abs, tag = 'smem constant byte address 0x4 - core index']
  #allocation1 [shape = 'u32[72,128]{1,0:T(1,128)}', space=vmem, size = 0x9000, scoped, tag = 'internal scratch']
  %s0 = inlined_call_operand.vmem [shape: f32[19,8], index: 0, kind: input, shape index: {}]
  %s1 = inlined_call_operand.vmem [shape: f32[32,19], index: 1, kind: input, shape index: {}]
  %s2 = inlined_call_operand.vmem [shape: f32[32,1], index: 2, kind: input, shape index: {}]
  %s3 = inlined_call_operand.vmem [shape: f32[16,32], index: 3, kind: input, shape index: {}]
  %s4 = inlined_call_operand.vmem [shape: f32[16,1], index: 4, kind: input, shape index: {}]
  %s5 = inlined_call_operand.vmem [shape: f32[3,16], index: 5, kind: input, shape index: {}]
  %s6 = inlined_call_operand.vmem [shape: f32[3,1], index: 6, kind: input, shape index: {}]
  %s7 = inlined_call_operand.hbm [shape: f32[3,8], index: 7, kind: output, shape index: {}]
  %s8 = sld [smem:[#allocation0]]
  $region38: #{tpu_custom_call.1} parent=0
    _
  %s10 = ssub.s32 1, %s8
  %s11 = scalar_select 0, %s10, %s8
  $region1: #{tpu_custom_call.1} parent=0
    #allocation2 [shape = 'u8[2048]{0}', space=vmem, size = 0x800, scoped, tag = 'output window, operand 0, single buffered']
    #allocation3 [shape = 's32[1]{0}', space=sflag, size = 0x4, scoped, tag = 'scoped memory for tpu_custom_call.1']
    %12 = vsyncpa [#allocation3], 0
    // Predicated region
    $region2: #{tpu_custom_call.1} parent=1 // pred_check
      _
    $region3: #{tpu_custom_call.1} parent=1 // pred_check_branch
      %14 = sbr.rel (0) target = $region5
    $region4: #{tpu_custom_call.1} parent=1 // pred_region
      _
    $region5: #{tpu_custom_call.1} parent=1 // pred_fallthru
      _
    // Predicated region
    $region6: #{tpu_custom_call.1} parent=1 // pred_check
      _
    $region7: #{tpu_custom_call.1} parent=1 // pred_check_branch
      %16 = sbr.rel (0) target = $region9
    $region8: #{tpu_custom_call.1} parent=1 // pred_region
      _
    $region9: #{tpu_custom_call.1} parent=1 // pred_fallthru
      _
    // Predicated region
    $region10: #{tpu_custom_call.1} parent=1 // pred_check
      _
    $region11: #{tpu_custom_call.1} parent=1 // pred_check_branch
      %18 = sbr.rel (0) target = $region13
    $region12: #{tpu_custom_call.1} parent=1 // pred_region
      _
    $region13: #{tpu_custom_call.1} parent=1 // pred_fallthru
      _
    // Predicated region
    $region14: #{tpu_custom_call.1} parent=1 // pred_check
      _
    $region15: #{tpu_custom_call.1} parent=1 // pred_check_branch
      %20 = sbr.rel (0) target = $region17
    $region16: #{tpu_custom_call.1} parent=1 // pred_region
      _
    $region17: #{tpu_custom_call.1} parent=1 // pred_fallthru
      _
    // Predicated region
    $region18: #{tpu_custom_call.1} parent=1 // pred_check
      _
    $region19: #{tpu_custom_call.1} parent=1 // pred_check_branch
      %22 = sbr.rel (0) target = $region21
    $region20: #{tpu_custom_call.1} parent=1 // pred_region
      _
    $region21: #{tpu_custom_call.1} parent=1 // pred_fallthru
      _
    // Predicated region
    $region22: #{tpu_custom_call.1} parent=1 // pred_check
      _
    $region23: #{tpu_custom_call.1} parent=1 // pred_check_branch
      %24 = sbr.rel (0) target = $region25
    $region24: #{tpu_custom_call.1} parent=1 // pred_region
      _
    $region25: #{tpu_custom_call.1} parent=1 // pred_fallthru
      _
    // Predicated region
    $region26: #{tpu_custom_call.1} parent=1 // pred_check
      _
    $region27: #{tpu_custom_call.1} parent=1 // pred_check_branch
      %26 = sbr.rel (0) target = $region29
    $region28: #{tpu_custom_call.1} parent=1 // pred_region
      _
    $region29: #{tpu_custom_call.1} parent=1 // pred_fallthru
      _
    %v27 = vld [vmem:[%s0] sm:$0xff]
    %v28 = vld [vmem:[%s0 + $0x8] sm:$0xff]
    %v29 = vld [vmem:[%s0 + $0x10] sm:$0x7]
    %v30 = vld [vmem:[%s1] sm:$0xff]
    %v31 = vld [vmem:[%s1 + $0x8] sm:$0xff]
    %v32 = vld [vmem:[%s1 + $0x10] sm:$0xff]
    %v33 = vld [vmem:[%s1 + $0x18] sm:$0xff]
    %v34 = vld [vmem:[%s2] sm:$0xff]
    %v35 = vld [vmem:[%s2 + $0x8] sm:$0xff]
    %v36 = vld [vmem:[%s2 + $0x10] sm:$0xff]
    %v37 = vld [vmem:[%s2 + $0x18] sm:$0xff]
    %39 = vset.pattern.permute.xlu0 0
    %40 = vperm.xlu0 %39, %v34
    %v41 = vpop.permute.xlu0 %40
    %44 = vset.pattern.permute.xlu0 0
    %45 = vperm.xlu0 %44, %v35
    %v46 = vpop.permute.xlu0 %45
    %49 = vset.pattern.permute.xlu0 0
    %50 = vperm.xlu0 %49, %v36
    %v51 = vpop.permute.xlu0 %50
    %54 = vset.pattern.permute.xlu0 0
    %55 = vperm.xlu0 %54, %v37
    %v56 = vpop.permute.xlu0 %55
    %vm58 = vcmask 154624
    %v60 = vsel %vm58, %v30, 0
    %v63 = vsel %vm58, %v31, 0
    %v66 = vsel %vm58, %v32, 0
    %v69 = vsel %vm58, %v33, 0
    %vm71 = vcmask 1042432
    %v73 = vsel %vm71, %v29, 0
    %75 = vmatpush.msra.mxu0 0.0
    %76 = vmatpush.msra.mxu0 0.0
    %77 = vmatpush.msra.mxu0 0.0
    %78 = vmatpush.msra.mxu0 0.0
    %79 = vmatpush.msra.mxu0 0.0
    %80 = vmatpush.msra.mxu0 0.0
    %81 = vmatpush.msra.mxu0 0.0
    %82 = vmatpush.msra.mxu0 0.0
    %83 = vmatpush.msra.mxu0 0.0
    %84 = vmatpush.msra.mxu0 0.0
    %85 = vmatpush.msra.mxu0 0.0
    %86 = vmatpush.msra.mxu0 0.0
    %87 = vmatpush.msra.mxu0 0.0
    %88 = vmatpush.msra.mxu0 %v73
    %89 = vmatpush.msra.mxu0 %v28
    %90 = vmatpush.msra.mxu0 %v27
    %91 = vmatmul.f32.gmra.mxu0 %v60
    %v92 = vpop.f32.mrf.mxu0
    %v93 = vadd.f32 %v41, %v92
    %94 = vmatmul.f32.gmra.mxu0 %v63
    %v95 = vpop.f32.mrf.mxu0
    %v96 = vadd.f32 %v46, %v95
    %97 = vmatmul.f32.gmra.mxu0 %v66
    %v98 = vpop.f32.mrf.mxu0
    %v99 = vadd.f32 %v51, %v98
    %100 = vmatmul.f32.gmra.mxu0 %v69
    %v101 = vpop.f32.mrf.mxu0
    %v102 = vadd.f32 %v56, %v101
    %103 = vdwg.mxu0
    %v104 = vmax.f32 %v93, 0.0
    %v105 = vmax.f32 %v96, 0.0
    %v106 = vmax.f32 %v99, 0.0
    %v107 = vmax.f32 %v102, 0.0
    %v108 = vld [vmem:[%s3] sm:$0xff]
    %v109 = vld [vmem:[%s3 + $0x8] sm:$0xff]
    %v110 = vld [vmem:[%s4] sm:$0xff]
    %v111 = vld [vmem:[%s4 + $0x8] sm:$0xff]
    %113 = vset.pattern.permute.xlu0 0
    %114 = vperm.xlu0 %113, %v110
    %v115 = vpop.permute.xlu0 %114
    %118 = vset.pattern.permute.xlu0 0
    %119 = vperm.xlu0 %118, %v111
    %v120 = vpop.permute.xlu0 %119
    %vm122 = vcmask 261120
    %v124 = vsel %vm122, %v108, 0
    %v127 = vsel %vm122, %v109, 0
    %129 = vmatpush.msra.mxu0 0.0
    %130 = vmatpush.msra.mxu0 0.0
    %131 = vmatpush.msra.mxu0 0.0
    %132 = vmatpush.msra.mxu0 0.0
    %133 = vmatpush.msra.mxu0 0.0
    %134 = vmatpush.msra.mxu0 0.0
    %135 = vmatpush.msra.mxu0 0.0
    %136 = vmatpush.msra.mxu0 0.0
    %137 = vmatpush.msra.mxu0 0.0
    %138 = vmatpush.msra.mxu0 0.0
    %139 = vmatpush.msra.mxu0 0.0
    %140 = vmatpush.msra.mxu0 0.0
    %141 = vmatpush.msra.mxu0 %v107
    %142 = vmatpush.msra.mxu0 %v106
    %143 = vmatpush.msra.mxu0 %v105
    %144 = vmatpush.msra.mxu0 %v104
    %145 = vmatmul.f32.gmra.mxu0 %v124
    %v146 = vpop.f32.mrf.mxu0
    %v147 = vadd.f32 %v115, %v146
    %148 = vmatmul.f32.gmra.mxu0 %v127
    %v149 = vpop.f32.mrf.mxu0
    %v150 = vadd.f32 %v120, %v149
    %151 = vdwg.mxu0
    %v152 = vmax.f32 %v147, 0.0
    %v153 = vmax.f32 %v150, 0.0
    %v154 = vld [vmem:[%s5] sm:$0x7]
    %v155 = vld [vmem:[%s6] sm:$0x7]
    %157 = vset.pattern.permute.xlu0 0
    %158 = vperm.xlu0 %157, %v155
    %v159 = vpop.permute.xlu0 %158
    %vm161 = vcmask 130048
    %v163 = vsel %vm161, %v154, 0
    %165 = vmatpush.msra.mxu0 0.0
    %166 = vmatpush.msra.mxu0 0.0
    %167 = vmatpush.msra.mxu0 0.0
    %168 = vmatpush.msra.mxu0 0.0
    %169 = vmatpush.msra.mxu0 0.0
    %170 = vmatpush.msra.mxu0 0.0
    %171 = vmatpush.msra.mxu0 0.0
    %172 = vmatpush.msra.mxu0 0.0
    %173 = vmatpush.msra.mxu0 0.0
    %174 = vmatpush.msra.mxu0 0.0
    %175 = vmatpush.msra.mxu0 0.0
    %176 = vmatpush.msra.mxu0 0.0
    %177 = vmatpush.msra.mxu0 0.0
    %178 = vmatpush.msra.mxu0 0.0
    %179 = vmatpush.msra.mxu0 %v153
    %180 = vmatpush.msra.mxu0 %v152
    %181 = vmatmul.f32.gmra.mxu0 %v163
    %v182 = vpop.f32.mrf.mxu0
    %v183 = vadd.f32 %v159, %v182
    %184 = vdwg.mxu0
    %v186 = vrot.slane %v183, 1
    %v188 = vmax.f32 %v183, %v186
    %v189 = vrot.slane %v183, 2
    %v191 = vmax.f32 %v188, %v189
    %v192 = vperm.slane %v191, 0
    %v193 = vsub.f32 %v183, %v192
    %v194 = vmul.f32 %v193, 1.442695
    %v195 = vpow.pop %v194
    %v197 = vrot.slane %v195, 1
    %v199 = vadd.f32 %v195, %v197
    %v200 = vrot.slane %v195, 2
    %v202 = vadd.f32 %v199, %v200
    %v203 = vperm.slane %v202, 0
    %v204 = vrcp.pop %v203
    %v205 = vmul.f32 %v203, %v204
    %v206 = vsub.f32 1.0, %v205
    %v207 = vmul.f32 %v204, %v206
    %v208 = vadd.f32 %v204, %v207
    %vm209 = vweird.f32 %v203
    %vm210 = vweird.f32 %v204
    %vm211 = vmor %vm209, %vm210
    %v212 = vsel %vm211, %v204, %v208
    %v213 = vand.u32 2147483647, %v203
    %vm214 = vcmp.eq.f32.partialorder %v213, 8.507059e+37
    %v215 = vand.u32 %v203, 2147483648
    %v216 = vor.u32 1.1754944e-38, %v215
    %v217 = vsel %vm214, %v216, %v212
    %v218 = vmul.f32 %v195, %v217
    %219 = vst [vmem:[#allocation2] sm:$0x7] %v218
    // Predicated region
    $region30: #{tpu_custom_call.1} parent=1 // pred_check
      _
    $region31: #{tpu_custom_call.1} parent=1 // pred_check_branch
      %221 = sbr.rel (0) target = $region33
    $region32: #{tpu_custom_call.1} parent=1 // pred_region
      %223 = vsyncadd [#allocation3], 0
      %s225 = sshll.u32 [#allocation2], 4
      %s226 = int_to_ptr.vmem [resolvable:$true] %s225
      %s227 = sshll.u32 %s7, 4
      %s228 = int_to_ptr.hbm [resolvable:$true] %s227
      %230 = dma.vmem_to_hbm [thread:$0]  %s226, 64, %s228, [#allocation3]
    $region33: #{tpu_custom_call.1} parent=1 // pred_fallthru
      _
    // Predicated region
    $region34: #{tpu_custom_call.1} parent=1 // pred_check
      _
    $region35: #{tpu_custom_call.1} parent=1 // pred_check_branch
      %232 = sbr.rel (0) target = $region37
    $region36: #{tpu_custom_call.1} parent=1 // pred_region
      %234 = dma.done [#allocation3], 64
    $region37: #{tpu_custom_call.1} parent=1 // pred_fallthru
      _
    %235 = vsyncpa [#allocation3], 1

</llo_original>
